<compile_context>
chip_gen: v7x
topology: tpu7x:2x2x1
jax: 0.10.0
libtpu: 0.0.40
codegen_flags: <defaults>
</compile_context>

<pallas_src>
import jax
import jax.numpy as jnp
from jax.experimental import pallas as pl
from jax.experimental.pallas import tpu as pltpu

_LANE = 128
_SUBLANE = 8
# ~2 MiB per block -> (in + out) x double-buffer = 4 x 2 MiB = 8 MiB resident,
# safe on every TPU generation's default scoped VMEM budget.
_TARGET_BLOCK_BYTES = 2 * 1024 * 1024


def _copy_kernel(src_ref, dst_ref):
    # Forward of Dataset: return the parameter unchanged.
    dst_ref[...] = src_ref[...]


def _choose_tile_rows(n_rows: int, row_bytes: int) -> int:
    """Largest row-tile near the VMEM target, aligned to the 8-sublane rule."""
    rows = max(1, _TARGET_BLOCK_BYTES // max(1, row_bytes))
    rows = min(rows, n_rows)
    if n_rows <= _SUBLANE:
        # Block equal to the full axis extent is always legal.
        return n_rows
    rows = max(_SUBLANE, (rows // _SUBLANE) * _SUBLANE)
    return rows


def dataset_forward(points: jax.Array) -> jax.Array:
    """Pallas equivalent of Dataset.forward(): returns `points` (materialized).

    The array is streamed through VMEM with lane-dense, multi-row blocks.
    """
    orig_shape = points.shape
    total = points.size
    itemsize = jnp.dtype(points.dtype).itemsize

    if total % _LANE == 0:
        # Lane-dense view: last dim is a multiple of 128 -> unmasked stores
        # and coarse DMA granularity, independent of n_coords.
        lane = _LANE
        for cand in (1024, 512, 256):
            if total % cand == 0:
                lane = cand
                break
        rows = total // lane
        x2d = points.reshape(rows, lane)
    else:
        # Fallback for odd element counts: keep the natural 2-D layout; the
        # block spans the full last dim (always a legal block shape).
        if points.ndim >= 2:
            x2d = points.reshape(-1, orig_shape[-1])
        else:
            x2d = points.reshape(1, -1)
        rows, lane = x2d.shape

    tile_rows = _choose_tile_rows(rows, lane * itemsize)
    grid = (pl.cdiv(rows, tile_rows),)

    out2d = pl.pallas_call(
        _copy_kernel,
        out_shape=jax.ShapeDtypeStruct((rows, lane), x2d.dtype),
        grid=grid,
        in_specs=[pl.BlockSpec((tile_rows, lane), lambda i: (i, 0))],
        out_specs=pl.BlockSpec((tile_rows, lane), lambda i: (i, 0)),
        compiler_params=pltpu.CompilerParams(
            dimension_semantics=("parallel",),
        ),
    )(x2d)
    return out2d.reshape(orig_shape)


class DatasetPallas:
    """Mirror of the PyTorch Dataset module using an efficient Pallas copy."""

    def __init__(self, points: jax.Array):
        # torch.Tensor(points) always yields a float32 tensor, so the float32
        # cast here matches the reference module's Parameter dtype.
        self.points = jnp.asarray(points, dtype=jnp.float32)

    def forward(self) -> jax.Array:
        # NOTE: for a pure identity, returning `self.points` directly is the
        # zero-cost option; the Pallas copy below is kept as the materialized
        # forward path with lane-dense, multi-MiB blocks.
        return dataset_forward(self.points)


if __name__ == "__main__":
    key = jax.random.PRNGKey(0)
    k0, k1 = jax.random.split(key)

    # Primary small case consistent with the module: (n_samples, n_coords).
    n_samples, n_coords = 8, 32
    points = jax.random.normal(k0, (n_samples, n_coords), dtype=jnp.float32)
    module = DatasetPallas(points)
    out = jax.block_until_ready(module.forward())
    assert out.shape == module.points.shape and out.dtype == module.points.dtype
    assert bool(jnp.all(out == module.points))

    # Odd-sized case exercises the non-128-multiple fallback path.
    odd = jax.random.normal(k1, (7, 5), dtype=jnp.float32)
    out_odd = jax.block_until_ready(dataset_forward(odd))
    assert bool(jnp.all(out_odd == odd))

    print("KERNEL_OK")
</pallas_src>

<mosaic_0001>
module attributes {stable_mosaic.version = 11 : i64} {
  func.func @_copy_kernel(%arg0: i32, %arg1: memref<1x256xf32, #tpu.memory_space<vmem>>, %arg2: memref<1x256xf32, #tpu.memory_space<vmem>>) attributes {dimension_semantics = [#tpu.dimension_semantics<parallel>], iteration_bounds = array<i64: 1>, scalar_prefetch = 0 : i64, scratch_operands = 0 : i64, tpu.core_type = #tpu.core_type<tc>, window_params = [{transform_indices = @transform_0, window_bounds = array<i64: 1, 256>}, {transform_indices = @transform_1, window_bounds = array<i64: 1, 256>}]} {
    %c0 = arith.constant 0 : index
    %c0_0 = arith.constant 0 : index
    %0 = vector.load %arg1[%c0, %c0_0] : memref<1x256xf32, #tpu.memory_space<vmem>>, vector<1x256xf32>
    %c0_1 = arith.constant 0 : index
    %c0_2 = arith.constant 0 : index
    %1 = vector.load %arg2[%c0_1, %c0_2] : memref<1x256xf32, #tpu.memory_space<vmem>>, vector<1x256xf32>
    tpu.vector_store %arg2[%c0_1, %c0_2], %0 {strides = array<i32>} : memref<1x256xf32, #tpu.memory_space<vmem>>, vector<1x256xf32>,
    return
  }
  func.func @transform_0(%arg0: i32) -> (i32, i32) {
    %c0_i32 = arith.constant 0 : i32
    %c0_i32_0 = arith.constant 0 : i32
    return %arg0, %c0_i32 : i32, i32
  }
  func.func @transform_1(%arg0: i32) -> (i32, i32) {
    %c0_i32 = arith.constant 0 : i32
    %c0_i32_0 = arith.constant 0 : i32
    return %arg0, %c0_i32 : i32, i32
  }
}

</mosaic_0001>

<llo_original>
// kernel: tpu_custom_call.1
$region0: #{tpu_custom_call.1}
  #allocation0 [shape = 'u32[]', space=smem, size = 0x4, offset = 0x4, fixed_abs, tag = 'smem constant byte address 0x4 - core index']
  #allocation1 [shape = 'u32[144,128]{1,0:T(1,128)}', space=vmem, size = 0x12000, scoped, tag = 'internal scratch']
  %s0 = inlined_call_operand.hbm [shape: f32[1,256], index: 0, kind: input, shape index: {}]
  %s1 = inlined_call_operand.hbm [shape: f32[1,256], index: 1, kind: output, shape index: {}]
  %s2 = sld [smem:[#allocation0]]
  $region18: #{tpu_custom_call.1} parent=0
    _
  %s4 = ssub.s32 1, %s2
  %s5 = scalar_select 0, %s4, %s2
  $region1: #{tpu_custom_call.1} parent=0
    #allocation2 [shape = 'u8[1024]{0}', space=vmem, size = 0x400, scoped, tag = 'input window, operand 0, single buffered']
    #allocation3 [shape = 's32[1]{0}', space=sflag, size = 0x4, scoped, tag = 'scoped memory for tpu_custom_call.1']
    #allocation4 [shape = 's32[1]{0}', space=sflag, size = 0x4, scoped, tag = 'scoped memory for tpu_custom_call.1']
    #allocation5 [shape = 'u8[1024]{0}', space=vmem, size = 0x400, scoped, tag = 'output window, operand 0, single buffered']
    %6 = vsyncpa [#allocation3], 0
    %7 = vsyncpa [#allocation4], 0
    // Predicated region
    $region2: #{tpu_custom_call.1} parent=1 // pred_check
      _
    $region3: #{tpu_custom_call.1} parent=1 // pred_check_branch
      %9 = sbr.rel (0) target = $region5
    $region4: #{tpu_custom_call.1} parent=1 // pred_region
      %s11 = ssub.s32 32, 32
      %12 = vsyncadd [#allocation3], %s11
      %s14 = sshll.u32 [#allocation2], 4
      %s15 = int_to_ptr.vmem [resolvable:$true] %s14
      %17 = dma.hbm_to_vmem [thread:$0]  %s0, 32, %s15, [#allocation3]
    $region5: #{tpu_custom_call.1} parent=1 // pred_fallthru
      _
    // Predicated region
    $region6: #{tpu_custom_call.1} parent=1 // pred_check
      _
    $region7: #{tpu_custom_call.1} parent=1 // pred_check_branch
      %19 = sbr.rel (0) target = $region9
    $region8: #{tpu_custom_call.1} parent=1 // pred_region
      %20 = dma.done [#allocation3], 32
    $region9: #{tpu_custom_call.1} parent=1 // pred_fallthru
      _
    %v21 = vld [vmem:[#allocation2] sm:$0x3]
    %v22 = vlaneseq
    %vm23 = vcmp.ge.s32.totalorder %v22, 0
    %vm24 = vcmp.lt.s32.totalorder %v22, 256
    %vm25 = vmand %vm23, %vm24
    %26 = vst.msk [vmem:[#allocation5] sm:$0x3] %vm25, %v21
    // Predicated region
    $region10: #{tpu_custom_call.1} parent=1 // pred_check
      _
    $region11: #{tpu_custom_call.1} parent=1 // pred_check_branch
      %28 = sbr.rel (0) target = $region13
    $region12: #{tpu_custom_call.1} parent=1 // pred_region
      %s30 = ssub.s32 32, 32
      %31 = vsyncadd [#allocation4], %s30
      %s33 = sshll.u32 [#allocation5], 4
      %s34 = int_to_ptr.vmem [resolvable:$true] %s33
      %36 = dma.vmem_to_hbm [thread:$0]  %s34, 32, %s1, [#allocation4]
    $region13: #{tpu_custom_call.1} parent=1 // pred_fallthru
      _
    // Predicated region
    $region14: #{tpu_custom_call.1} parent=1 // pred_check
      _
    $region15: #{tpu_custom_call.1} parent=1 // pred_check_branch
      %38 = sbr.rel (0) target = $region17
    $region16: #{tpu_custom_call.1} parent=1 // pred_region
      %39 = dma.done [#allocation4], 32
    $region17: #{tpu_custom_call.1} parent=1 // pred_fallthru
      _
    %40 = vsyncpa [#allocation3], 1
    %41 = vsyncpa [#allocation4], 1

</llo_original>
